<compile_context>
chip_gen: v5e
topology: v5e:2x2
jax: 0.10.0
libtpu: 0.0.40
codegen_flags: <defaults>
</compile_context>

<pallas_src>
import jax
import jax.numpy as jnp
import numpy as np
from jax.experimental import pallas as pl
from jax.experimental.pallas import tpu as pltpu


def _pars_forward_kernel(z_ref, o_ref):
    # Identity forward: out = z (aliased, so this writes the data back in place).
    o_ref[...] = z_ref[...]


def _row_tile(B: int, D: int, dtype) -> int:
    """Pick a lane-dense row block: full D, as many rows as ~2 MiB allows."""
    itemsize = jnp.dtype(dtype).itemsize
    # Sublane packing: f32 -> 8 rows/vreg, bf16 -> 16, int8/fp8 -> 32.
    sublane = {4: 8, 2: 16, 1: 32}.get(itemsize, 8)
    # ~2 MiB per block: 2 input + 2 output double-buffers = ~8 MiB, comfortably
    # under even v5e's 16 MiB default scoped-VMEM limit, while large enough to
    # amortize the ~0.35 us per-grid-step overhead (>=85% of HBM roofline).
    target_block_bytes = 2 * 1024 * 1024
    row_bytes = max(D * itemsize, 1)
    rows = (target_block_bytes // row_bytes) // sublane * sublane
    rows = max(rows, sublane)
    if rows >= B:
        return B  # whole array is one row block (full extent is always legal)
    return rows


def pars_forward(z: jax.Array) -> jax.Array:
    """Pallas implementation of Pars.forward(): returns the parameter z."""
    B, D = z.shape
    tb = _row_tile(B, D, z.dtype)
    grid = (pl.cdiv(B, tb),)  # 1-D grid over rows only; D stays lane-dense

    return pl.pallas_call(
        _pars_forward_kernel,
        out_shape=jax.ShapeDtypeStruct((B, D), z.dtype),
        grid_spec=pltpu.PrefetchScalarGridSpec(
            num_scalar_prefetch=0,
            grid=grid,
            in_specs=[pl.BlockSpec((tb, D), lambda i: (i, 0))],
            out_specs=pl.BlockSpec((tb, D), lambda i: (i, 0)),
        ),
        # Alias parameter -> output: no second HBM allocation for the identity.
        input_output_aliases={0: 0},
        compiler_params=pltpu.CompilerParams(
            dimension_semantics=("parallel",),  # shards rows across v7x's 2 TCs
        ),
    )(z)


class ParsJax:
    """JAX counterpart of the PyTorch `Pars` module."""

    def __init__(self, dims: int, batch_size: int = 16, *, key=None):
        if key is None:
            key = jax.random.PRNGKey(0)
        # torch.zeros(batch_size, dims).normal_(std=1)  ==  N(0, 1) init
        self.z = jax.random.normal(key, (batch_size, dims), dtype=jnp.float32)

    def __call__(self) -> jax.Array:
        return pars_forward(self.z)


if __name__ == "__main__":
    # Small shapes consistent with the module: batch_size=16, dims=128.
    dims = 128
    batch_size = 16

    key = jax.random.PRNGKey(0)
    module = ParsJax(dims=dims, batch_size=batch_size, key=key)

    # Host snapshot of the parameter (robust even if the aliased buffer is
    # donated under a jitted caller).
    z_host = np.asarray(module.z)

    out = module()
    out = jax.block_until_ready(out)

    # Correctness: forward() must return the parameter exactly.
    assert out.shape == (batch_size, dims), out.shape
    assert out.dtype == jnp.float32, out.dtype
    assert np.array_equal(np.asarray(out), z_host)

    print("KERNEL_OK")
</pallas_src>

<mosaic_0001>
module attributes {stable_mosaic.version = 11 : i64} {
  func.func @_pars_forward_kernel(%arg0: i32, %arg1: memref<16x128xf32, #tpu.memory_space<vmem>>, %arg2: memref<16x128xf32, #tpu.memory_space<vmem>>) attributes {dimension_semantics = [#tpu.dimension_semantics<parallel>], iteration_bounds = array<i64: 1>, scalar_prefetch = 0 : i64, scratch_operands = 0 : i64, tpu.core_type = #tpu.core_type<tc>, window_params = [{transform_indices = @transform_0, window_bounds = array<i64: 16, 128>}, {transform_indices = @transform_1, window_bounds = array<i64: 16, 128>}]} {
    %c0 = arith.constant 0 : index
    %c0_0 = arith.constant 0 : index
    %0 = vector.load %arg1[%c0, %c0_0] : memref<16x128xf32, #tpu.memory_space<vmem>>, vector<16x128xf32>
    %c0_1 = arith.constant 0 : index
    %c0_2 = arith.constant 0 : index
    %1 = vector.load %arg2[%c0_1, %c0_2] : memref<16x128xf32, #tpu.memory_space<vmem>>, vector<16x128xf32>
    tpu.vector_store %arg2[%c0_1, %c0_2], %0 {strides = array<i32>} : memref<16x128xf32, #tpu.memory_space<vmem>>, vector<16x128xf32>,
    return
  }
  func.func @transform_0(%arg0: i32) -> (i32, i32) {
    %c0_i32 = arith.constant 0 : i32
    %c0_i32_0 = arith.constant 0 : i32
    return %arg0, %c0_i32 : i32, i32
  }
  func.func @transform_1(%arg0: i32) -> (i32, i32) {
    %c0_i32 = arith.constant 0 : i32
    %c0_i32_0 = arith.constant 0 : i32
    return %arg0, %c0_i32 : i32, i32
  }
}

</mosaic_0001>

<llo_original>
// kernel: tpu_custom_call.1
$region0: #{tpu_custom_call.1}
  #allocation0 [shape = 'u32[]', space=smem, size = 0x4, offset = 0x4, fixed_abs, tag = 'smem constant byte address 0x4 - core index']
  #allocation1 [shape = 'u32[72,128]{1,0:T(1,128)}', space=vmem, size = 0x9000, scoped, tag = 'internal scratch']
  %s0 = inlined_call_operand.hbm [shape: f32[16,128], index: 0, kind: input, shape index: {}, may-alias: {0,1}]
  %s1 = inlined_call_operand.hbm [shape: f32[16,128], index: 1, kind: output, shape index: {}, may-alias: {0,1}]
  %s2 = sld [smem:[#allocation0]]
  $region18: #{tpu_custom_call.1} parent=0
    _
  %s4 = ssub.s32 1, %s2
  %s5 = scalar_select 0, %s4, %s2
  $region1: #{tpu_custom_call.1} parent=0
    #allocation2 [shape = 'u8[8192]{0}', space=vmem, size = 0x2000, scoped, tag = 'input window, operand 0, single buffered']
    #allocation3 [shape = 's32[1]{0}', space=sflag, size = 0x4, scoped, tag = 'scoped memory for tpu_custom_call.1']
    #allocation4 [shape = 's32[1]{0}', space=sflag, size = 0x4, scoped, tag = 'scoped memory for tpu_custom_call.1']
    #allocation5 [shape = 'u8[8192]{0}', space=vmem, size = 0x2000, scoped, tag = 'output window, operand 0, single buffered']
    %6 = vsyncpa [#allocation3], 0
    %7 = vsyncpa [#allocation4], 0
    // Predicated region
    $region2: #{tpu_custom_call.1} parent=1 // pred_check
      _
    $region3: #{tpu_custom_call.1} parent=1 // pred_check_branch
      %9 = sbr.rel (0) target = $region5
    $region4: #{tpu_custom_call.1} parent=1 // pred_region
      %11 = vsyncadd [#allocation3], 0
      %s12 = sshll.u32 %s0, 4
      %s13 = int_to_ptr.hbm [resolvable:$true] %s12
      %s14 = sshll.u32 [#allocation2], 4
      %s15 = int_to_ptr.vmem [resolvable:$true] %s14
      %20 = dma.hbm_to_vmem [thread:$0]  %s13, 256, %s15, [#allocation3], 128, 128, 8
    $region5: #{tpu_custom_call.1} parent=1 // pred_fallthru
      _
    // Predicated region
    $region6: #{tpu_custom_call.1} parent=1 // pred_check
      _
    $region7: #{tpu_custom_call.1} parent=1 // pred_check_branch
      %22 = sbr.rel (0) target = $region9
    $region8: #{tpu_custom_call.1} parent=1 // pred_region
      %24 = dma.done [#allocation3], 256
    $region9: #{tpu_custom_call.1} parent=1 // pred_fallthru
      _
    %v25 = vld [vmem:[#allocation2] sm:$0xff]
    %v26 = vld [vmem:[#allocation2 + $0x8] sm:$0xff]
    %27 = vst [vmem:[#allocation5] sm:$0xff] %v25
    %28 = vst [vmem:[#allocation5 + $0x8] sm:$0xff] %v26
    // Predicated region
    $region10: #{tpu_custom_call.1} parent=1 // pred_check
      _
    $region11: #{tpu_custom_call.1} parent=1 // pred_check_branch
      %30 = sbr.rel (0) target = $region13
    $region12: #{tpu_custom_call.1} parent=1 // pred_region
      %32 = vsyncadd [#allocation4], 0
      %s33 = sshll.u32 [#allocation5], 4
      %s34 = int_to_ptr.vmem [resolvable:$true] %s33
      %s35 = sshll.u32 %s1, 4
      %s36 = int_to_ptr.hbm [resolvable:$true] %s35
      %41 = dma.vmem_to_hbm [thread:$0]  %s34, 256, %s36, [#allocation4], 128, 128, 8
    $region13: #{tpu_custom_call.1} parent=1 // pred_fallthru
      _
    // Predicated region
    $region14: #{tpu_custom_call.1} parent=1 // pred_check
      _
    $region15: #{tpu_custom_call.1} parent=1 // pred_check_branch
      %43 = sbr.rel (0) target = $region17
    $region16: #{tpu_custom_call.1} parent=1 // pred_region
      %45 = dma.done [#allocation4], 256
    $region17: #{tpu_custom_call.1} parent=1 // pred_fallthru
      _
    %46 = vsyncpa [#allocation3], 1
    %47 = vsyncpa [#allocation4], 1

</llo_original>
